<compile_context>
chip_gen: v7x
topology: tpu7x:2x2x1
jax: 0.10.0
libtpu: 0.0.40
codegen_flags: <defaults>
</compile_context>

<pallas_src>
import jax
import jax.numpy as jnp
from jax.experimental import pallas as pl
from jax.experimental.pallas import tpu as pltpu

_HIDDEN = 50
_N_CLASSES = 10
_OUT_PAD = 128        # lane-dense padded output width (one full vreg lane extent)
_NEG_BIG = -1e30      # bias padding value -> exp() underflows to 0 in softmax


def _mish(x):
    """F.mish(x) = x * tanh(softplus(x)); numerically stable softplus, f32 math."""
    sp = jnp.log1p(jnp.exp(-jnp.abs(x))) + jnp.maximum(x, 0.0)
    return x * jnp.tanh(sp)


def _mlp_kernel(x_ref, w1_ref, b1_ref, w2_ref, b2_ref, w3_ref, b3_ref, o_ref):
    # layer1 + Mish  (bf16 MXU inputs, f32 accumulate + f32 elementwise)
    h = jnp.dot(x_ref[...], w1_ref[...], preferred_element_type=jnp.float32) + b1_ref[...]
    h = _mish(h)

    # layer2 + Mish
    h = jnp.dot(h.astype(jnp.bfloat16), w2_ref[...],
                preferred_element_type=jnp.float32) + b2_ref[...]
    h = _mish(h)

    # layer3 logits, padded to 128 lanes (pad lanes carry -1e30 bias -> exp()==0)
    logits = jnp.dot(h.astype(jnp.bfloat16), w3_ref[...],
                     preferred_element_type=jnp.float32) + b3_ref[...]

    # softmax over the lane axis; padded lanes contribute ~0 to the denominator
    m = jnp.max(logits, axis=-1, keepdims=True)
    e = jnp.exp(logits - m)
    denom = jnp.sum(e, axis=-1, keepdims=True)
    o_ref[...] = (e * pl.reciprocal(denom, approx=True)).astype(o_ref.dtype)


def model4_forward(x, params, *, block_batch=1024):
    """x: (B, input_dim) f32. params: dict with bf16 w1,w2,w3 ((in,out) layout, w3
    padded to 128 out lanes) and f32 b1,b2,b3 ((1,out) rows, b3 padded with -1e30)."""
    w1, b1 = params["w1"], params["b1"]
    w2, b2 = params["w2"], params["b2"]
    w3, b3 = params["w3"], params["b3"]
    B, D = x.shape

    # Batch tile: multiple of 8 sublanes, capped at block_batch (VMEM-safe on v7x too).
    if B >= block_batch:
        tm = block_batch
    else:
        tm = max(8, ((B + 7) // 8) * 8)
    b_pad = pl.cdiv(B, tm) * tm

    xb = x.astype(jnp.bfloat16)          # halve HBM read bytes for the batch stream
    if b_pad != B:
        xb = jnp.pad(xb, ((0, b_pad - B), (0, 0)))

    const = lambda shape: pl.BlockSpec(shape, lambda i: (0,) * len(shape))

    out = pl.pallas_call(
        _mlp_kernel,
        out_shape=jax.ShapeDtypeStruct((b_pad, _OUT_PAD), jnp.float32),
        grid=(b_pad // tm,),
        in_specs=[
            pl.BlockSpec((tm, D), lambda i: (i, 0)),
            const(w1.shape), const(b1.shape),
            const(w2.shape), const(b2.shape),
            const(w3.shape), const(b3.shape),
        ],
        out_specs=pl.BlockSpec((tm, _OUT_PAD), lambda i: (i, 0)),
        compiler_params=pltpu.CompilerParams(
            dimension_semantics=("parallel",)),
    )(xb, w1, b1, w2, b2, w3, b3)

    return out[:B, :_N_CLASSES]


def init_params(key, input_dim):
    """Deterministic init matching nn.Linear(in, out): U(-1/sqrt(in), 1/sqrt(in)).
    Weights stored pre-transposed (in, out) in bf16; biases as (1, out) f32.
    Layer3 is padded to 128 output lanes (zero weights, -1e30 bias)."""
    ks = jax.random.split(key, 6)

    def linear(kw, kb, fan_in, fan_out):
        bound = 1.0 / jnp.sqrt(fan_in)
        w = jax.random.uniform(kw, (fan_in, fan_out), jnp.float32, -bound, bound)
        b = jax.random.uniform(kb, (1, fan_out), jnp.float32, -bound, bound)
        return w, b

    w1, b1 = linear(ks[0], ks[1], input_dim, _HIDDEN)
    w2, b2 = linear(ks[2], ks[3], _HIDDEN, _HIDDEN)
    w3, b3 = linear(ks[4], ks[5], _HIDDEN, _N_CLASSES)

    # Pad layer3 to a lane-dense 128-wide output.
    w3p = jnp.zeros((_HIDDEN, _OUT_PAD), jnp.float32).at[:, :_N_CLASSES].set(w3)
    b3p = jnp.full((1, _OUT_PAD), _NEG_BIG, jnp.float32).at[:, :_N_CLASSES].set(b3)

    return dict(
        w1=w1.astype(jnp.bfloat16), b1=b1,
        w2=w2.astype(jnp.bfloat16), b2=b2,
        w3=w3p.astype(jnp.bfloat16), b3=b3p,
    )


def reference_forward(x, params):
    """Pure-JAX reference (same bf16 matmul inputs, exact softmax over 10 classes)."""
    h = _mish(jnp.dot(x.astype(jnp.bfloat16), params["w1"],
                      preferred_element_type=jnp.float32) + params["b1"])
    h = _mish(jnp.dot(h.astype(jnp.bfloat16), params["w2"],
                      preferred_element_type=jnp.float32) + params["b2"])
    logits = jnp.dot(h.astype(jnp.bfloat16), params["w3"][:, :_N_CLASSES],
                     preferred_element_type=jnp.float32) + params["b3"][:, :_N_CLASSES]
    return jax.nn.softmax(logits, axis=1)


if __name__ == "__main__":
    key = jax.random.PRNGKey(0)
    k_x, k_p = jax.random.split(key)

    batch, input_dim = 8, 64  # sklearn digits: 8x8 images flattened to 64 features
    x = jax.random.normal(k_x, (batch, input_dim), jnp.float32)
    params = init_params(k_p, input_dim)

    out = model4_forward(x, params)
    out = jax.block_until_ready(out)

    ref = reference_forward(x, params)
    assert out.shape == (batch, _N_CLASSES)
    assert jnp.allclose(out, ref, atol=1e-3, rtol=1e-3), "mismatch vs reference"
    assert jnp.allclose(jnp.sum(out, axis=1), 1.0, atol=5e-3), "softmax rows must sum to ~1"

    print("KERNEL_OK")
</pallas_src>

<mosaic_0001>
module attributes {stable_mosaic.version = 11 : i64} {
  func.func @_mlp_kernel(%arg0: i32, %arg1: memref<8x64xbf16, #tpu.memory_space<vmem>>, %arg2: memref<64x50xbf16, #tpu.memory_space<vmem>>, %arg3: memref<1x50xf32, #tpu.memory_space<vmem>>, %arg4: memref<50x50xbf16, #tpu.memory_space<vmem>>, %arg5: memref<1x50xf32, #tpu.memory_space<vmem>>, %arg6: memref<50x128xbf16, #tpu.memory_space<vmem>>, %arg7: memref<1x128xf32, #tpu.memory_space<vmem>>, %arg8: memref<8x128xf32, #tpu.memory_space<vmem>>) attributes {dimension_semantics = [#tpu.dimension_semantics<parallel>], iteration_bounds = array<i64: 1>, scalar_prefetch = 0 : i64, scratch_operands = 0 : i64, tpu.core_type = #tpu.core_type<tc>, window_params = [{transform_indices = @transform_0, window_bounds = array<i64: 8, 64>}, {pipeline_mode = #tpu.pipeline_mode<synchronous>, transform_indices = @transform_1, window_bounds = array<i64: 64, 50>}, {pipeline_mode = #tpu.pipeline_mode<synchronous>, transform_indices = @transform_2, window_bounds = array<i64: 1, 50>}, {pipeline_mode = #tpu.pipeline_mode<synchronous>, transform_indices = @transform_3, window_bounds = array<i64: 50, 50>}, {pipeline_mode = #tpu.pipeline_mode<synchronous>, transform_indices = @transform_4, window_bounds = array<i64: 1, 50>}, {pipeline_mode = #tpu.pipeline_mode<synchronous>, transform_indices = @transform_5, window_bounds = array<i64: 50, 128>}, {pipeline_mode = #tpu.pipeline_mode<synchronous>, transform_indices = @transform_6, window_bounds = array<i64: 1, 128>}, {transform_indices = @transform_7, window_bounds = array<i64: 8, 128>}]} {
    %c0 = arith.constant 0 : index
    %c0_0 = arith.constant 0 : index
    %0 = vector.load %arg1[%c0, %c0_0] : memref<8x64xbf16, #tpu.memory_space<vmem>>, vector<8x64xbf16>
    %c0_1 = arith.constant 0 : index
    %c0_2 = arith.constant 0 : index
    %1 = vector.load %arg2[%c0_1, %c0_2] : memref<64x50xbf16, #tpu.memory_space<vmem>>, vector<64x50xbf16>
    %cst = arith.constant dense<0.000000e+00> : vector<8x50xf32>
    %2 = tpu.matmul %0, %1, %cst {dimension_numbers = #tpu.dot_dimension_numbers<[1], [0], [0], [1], [0, 0, 1, 1], [], []>} : vector<8x64xbf16>, vector<64x50xbf16>, vector<8x50xf32> -> vector<8x50xf32>
    %c0_3 = arith.constant 0 : index
    %c0_4 = arith.constant 0 : index
    %3 = vector.load %arg3[%c0_3, %c0_4] : memref<1x50xf32, #tpu.memory_space<vmem>>, vector<1x50xf32>
    %4 = vector.broadcast %3 : vector<1x50xf32> to vector<8x50xf32>
    %5 = arith.addf %2, %4 : vector<8x50xf32>
    %6 = math.absf %5 : vector<8x50xf32>
    %cst_5 = arith.constant 0.000000e+00 : f32
    %7 = vector.broadcast %cst_5 : f32 to vector<8x50xf32>
    %8 = arith.subf %7, %6 : vector<8x50xf32>
    %9 = math.exp %8 : vector<8x50xf32>
    %10 = math.log1p %9 : vector<8x50xf32>
    %cst_6 = arith.constant 0.000000e+00 : f32
    %11 = vector.broadcast %cst_6 : f32 to vector<8x50xf32>
    %12 = arith.maximumf %5, %11 : vector<8x50xf32>
    %13 = arith.addf %10, %12 : vector<8x50xf32>
    %14 = math.tanh %13 : vector<8x50xf32>
    %15 = arith.mulf %5, %14 : vector<8x50xf32>
    %16 = arith.truncf %15 : vector<8x50xf32> to vector<8x50xbf16>
    %c0_7 = arith.constant 0 : index
    %c0_8 = arith.constant 0 : index
    %17 = vector.load %arg4[%c0_7, %c0_8] : memref<50x50xbf16, #tpu.memory_space<vmem>>, vector<50x50xbf16>
    %cst_9 = arith.constant dense<0.000000e+00> : vector<8x50xf32>
    %18 = tpu.matmul %16, %17, %cst_9 {dimension_numbers = #tpu.dot_dimension_numbers<[1], [0], [0], [1], [0, 0, 1, 1], [], []>} : vector<8x50xbf16>, vector<50x50xbf16>, vector<8x50xf32> -> vector<8x50xf32>
    %c0_10 = arith.constant 0 : index
    %c0_11 = arith.constant 0 : index
    %19 = vector.load %arg5[%c0_10, %c0_11] : memref<1x50xf32, #tpu.memory_space<vmem>>, vector<1x50xf32>
    %20 = vector.broadcast %19 : vector<1x50xf32> to vector<8x50xf32>
    %21 = arith.addf %18, %20 : vector<8x50xf32>
    %22 = math.absf %21 : vector<8x50xf32>
    %cst_12 = arith.constant 0.000000e+00 : f32
    %23 = vector.broadcast %cst_12 : f32 to vector<8x50xf32>
    %24 = arith.subf %23, %22 : vector<8x50xf32>
    %25 = math.exp %24 : vector<8x50xf32>
    %26 = math.log1p %25 : vector<8x50xf32>
    %cst_13 = arith.constant 0.000000e+00 : f32
    %27 = vector.broadcast %cst_13 : f32 to vector<8x50xf32>
    %28 = arith.maximumf %21, %27 : vector<8x50xf32>
    %29 = arith.addf %26, %28 : vector<8x50xf32>
    %30 = math.tanh %29 : vector<8x50xf32>
    %31 = arith.mulf %21, %30 : vector<8x50xf32>
    %32 = arith.truncf %31 : vector<8x50xf32> to vector<8x50xbf16>
    %c0_14 = arith.constant 0 : index
    %c0_15 = arith.constant 0 : index
    %33 = vector.load %arg6[%c0_14, %c0_15] : memref<50x128xbf16, #tpu.memory_space<vmem>>, vector<50x128xbf16>
    %cst_16 = arith.constant dense<0.000000e+00> : vector<8x128xf32>
    %34 = tpu.matmul %32, %33, %cst_16 {dimension_numbers = #tpu.dot_dimension_numbers<[1], [0], [0], [1], [0, 0, 1, 1], [], []>} : vector<8x50xbf16>, vector<50x128xbf16>, vector<8x128xf32> -> vector<8x128xf32>
    %c0_17 = arith.constant 0 : index
    %c0_18 = arith.constant 0 : index
    %35 = vector.load %arg7[%c0_17, %c0_18] : memref<1x128xf32, #tpu.memory_space<vmem>>, vector<1x128xf32>
    %36 = vector.broadcast %35 : vector<1x128xf32> to vector<8x128xf32>
    %37 = arith.addf %34, %36 : vector<8x128xf32>
    %cst_19 = arith.constant dense<0xFF800000> : vector<8xf32>
    %38 = vector.multi_reduction <maximumf>, %37, %cst_19 [1] : vector<8x128xf32> to vector<8xf32>
    %39 = vector.shape_cast %38 : vector<8xf32> to vector<8x1xf32>
    %40 = vector.broadcast %39 : vector<8x1xf32> to vector<8x128xf32>
    %41 = arith.subf %37, %40 : vector<8x128xf32>
    %42 = math.exp %41 : vector<8x128xf32>
    %cst_20 = arith.constant dense<0.000000e+00> : vector<8xf32>
    %43 = vector.multi_reduction <add>, %42, %cst_20 [1] : vector<8x128xf32> to vector<8xf32>
    %44 = vector.shape_cast %43 : vector<8xf32> to vector<8x1xf32>
    %45 = tpu.reciprocal %44 {approx = true} : vector<8x1xf32> -> vector<8x1xf32>
    %46 = vector.broadcast %45 : vector<8x1xf32> to vector<8x128xf32>
    %47 = arith.mulf %42, %46 : vector<8x128xf32>
    %c0_21 = arith.constant 0 : index
    %c0_22 = arith.constant 0 : index
    %48 = vector.load %arg8[%c0_21, %c0_22] : memref<8x128xf32, #tpu.memory_space<vmem>>, vector<8x128xf32>
    tpu.vector_store %arg8[%c0_21, %c0_22], %47 {strides = array<i32>} : memref<8x128xf32, #tpu.memory_space<vmem>>, vector<8x128xf32>,
    return
  }
  func.func @transform_0(%arg0: i32) -> (i32, i32) {
    %c0_i32 = arith.constant 0 : i32
    %c0_i32_0 = arith.constant 0 : i32
    return %arg0, %c0_i32 : i32, i32
  }
  func.func @transform_1(%arg0: i32) -> (i32, i32) {
    %c0_i32 = arith.constant 0 : i32
    %c0_i32_0 = arith.constant 0 : i32
    %c0_i32_1 = arith.constant 0 : i32
    return %c0_i32, %c0_i32_0 : i32, i32
  }
  func.func @transform_2(%arg0: i32) -> (i32, i32) {
    %c0_i32 = arith.constant 0 : i32
    %c0_i32_0 = arith.constant 0 : i32
    %c0_i32_1 = arith.constant 0 : i32
    return %c0_i32, %c0_i32_0 : i32, i32
  }
  func.func @transform_3(%arg0: i32) -> (i32, i32) {
    %c0_i32 = arith.constant 0 : i32
    %c0_i32_0 = arith.constant 0 : i32
    %c0_i32_1 = arith.constant 0 : i32
    return %c0_i32, %c0_i32_0 : i32, i32
  }
  func.func @transform_4(%arg0: i32) -> (i32, i32) {
    %c0_i32 = arith.constant 0 : i32
    %c0_i32_0 = arith.constant 0 : i32
    %c0_i32_1 = arith.constant 0 : i32
    return %c0_i32, %c0_i32_0 : i32, i32
  }
  func.func @transform_5(%arg0: i32) -> (i32, i32) {
    %c0_i32 = arith.constant 0 : i32
    %c0_i32_0 = arith.constant 0 : i32
    %c0_i32_1 = arith.constant 0 : i32
    return %c0_i32, %c0_i32_0 : i32, i32
  }
  func.func @transform_6(%arg0: i32) -> (i32, i32) {
    %c0_i32 = arith.constant 0 : i32
    %c0_i32_0 = arith.constant 0 : i32
    %c0_i32_1 = arith.constant 0 : i32
    return %c0_i32, %c0_i32_0 : i32, i32
  }
  func.func @transform_7(%arg0: i32) -> (i32, i32) {
    %c0_i32 = arith.constant 0 : i32
    %c0_i32_0 = arith.constant 0 : i32
    return %arg0, %c0_i32 : i32, i32
  }
}

</mosaic_0001>

<llo_original>
// kernel: tpu_custom_call.1
$region0: #{tpu_custom_call.1}
  #allocation0 [shape = 'u32[]', space=smem, size = 0x4, offset = 0x4, fixed_abs, tag = 'smem constant byte address 0x4 - core index']
  #allocation1 [shape = 'u32[144,128]{1,0:T(1,128)}', space=vmem, size = 0x12000, scoped, tag = 'internal scratch']
  %s0 = inlined_call_operand.vmem [shape: bf16[8,64], index: 0, kind: input, shape index: {}]
  %s1 = inlined_call_operand.vmem [shape: bf16[64,50], index: 1, kind: input, shape index: {}]
  %s2 = inlined_call_operand.vmem [shape: f32[1,50], index: 2, kind: input, shape index: {}]
  %s3 = inlined_call_operand.vmem [shape: bf16[50,50], index: 3, kind: input, shape index: {}]
  %s4 = inlined_call_operand.vmem [shape: f32[1,50], index: 4, kind: input, shape index: {}]
  %s5 = inlined_call_operand.vmem [shape: bf16[50,128], index: 5, kind: input, shape index: {}]
  %s6 = inlined_call_operand.vmem [shape: f32[1,128], index: 6, kind: input, shape index: {}]
  %s7 = inlined_call_operand.hbm [shape: f32[8,128], index: 7, kind: output, shape index: {}]
  %s8 = sld [smem:[#allocation0]]
  $region38: #{tpu_custom_call.1} parent=0
    _
  %s10 = ssub.s32 1, %s8
  %s11 = scalar_select 0, %s10, %s8
  $region1: #{tpu_custom_call.1} parent=0
    #allocation2 [shape = 'u8[4096]{0}', space=vmem, size = 0x1000, scoped, tag = 'output window, operand 0, single buffered']
    #allocation3 [shape = 's32[1]{0}', space=sflag, size = 0x4, scoped, tag = 'scoped memory for tpu_custom_call.1']
    %12 = vsyncpa [#allocation3], 0
    // Predicated region
    $region2: #{tpu_custom_call.1} parent=1 // pred_check
      _
    $region3: #{tpu_custom_call.1} parent=1 // pred_check_branch
      %14 = sbr.rel (0) target = $region5
    $region4: #{tpu_custom_call.1} parent=1 // pred_region
      _
    $region5: #{tpu_custom_call.1} parent=1 // pred_fallthru
      _
    // Predicated region
    $region6: #{tpu_custom_call.1} parent=1 // pred_check
      _
    $region7: #{tpu_custom_call.1} parent=1 // pred_check_branch
      %16 = sbr.rel (0) target = $region9
    $region8: #{tpu_custom_call.1} parent=1 // pred_region
      _
    $region9: #{tpu_custom_call.1} parent=1 // pred_fallthru
      _
    // Predicated region
    $region10: #{tpu_custom_call.1} parent=1 // pred_check
      _
    $region11: #{tpu_custom_call.1} parent=1 // pred_check_branch
      %18 = sbr.rel (0) target = $region13
    $region12: #{tpu_custom_call.1} parent=1 // pred_region
      _
    $region13: #{tpu_custom_call.1} parent=1 // pred_fallthru
      _
    // Predicated region
    $region14: #{tpu_custom_call.1} parent=1 // pred_check
      _
    $region15: #{tpu_custom_call.1} parent=1 // pred_check_branch
      %20 = sbr.rel (0) target = $region17
    $region16: #{tpu_custom_call.1} parent=1 // pred_region
      _
    $region17: #{tpu_custom_call.1} parent=1 // pred_fallthru
      _
    // Predicated region
    $region18: #{tpu_custom_call.1} parent=1 // pred_check
      _
    $region19: #{tpu_custom_call.1} parent=1 // pred_check_branch
      %22 = sbr.rel (0) target = $region21
    $region20: #{tpu_custom_call.1} parent=1 // pred_region
      _
    $region21: #{tpu_custom_call.1} parent=1 // pred_fallthru
      _
    // Predicated region
    $region22: #{tpu_custom_call.1} parent=1 // pred_check
      _
    $region23: #{tpu_custom_call.1} parent=1 // pred_check_branch
      %24 = sbr.rel (0) target = $region25
    $region24: #{tpu_custom_call.1} parent=1 // pred_region
      _
    $region25: #{tpu_custom_call.1} parent=1 // pred_fallthru
      _
    // Predicated region
    $region26: #{tpu_custom_call.1} parent=1 // pred_check
      _
    $region27: #{tpu_custom_call.1} parent=1 // pred_check_branch
      %26 = sbr.rel (0) target = $region29
    $region28: #{tpu_custom_call.1} parent=1 // pred_region
      _
    $region29: #{tpu_custom_call.1} parent=1 // pred_fallthru
      _
    %v28 = vld [vmem:[%s0] sm:$0xf]
    %v29 = vld [vmem:[%s1] sm:$0xf]
    %v30 = vld [vmem:[%s1 + $0x4] sm:$0xf]
    %v31 = vld [vmem:[%s1 + $0x8] sm:$0xf]
    %v32 = vld [vmem:[%s1 + $0xc] sm:$0xf]
    %v33 = vld [vmem:[%s1 + $0x10] sm:$0xf]
    %v34 = vld [vmem:[%s1 + $0x14] sm:$0xf]
    %v35 = vld [vmem:[%s1 + $0x18] sm:$0xf]
    %v36 = vld [vmem:[%s1 + $0x1c] sm:$0xf]
    %v37 = vld [vmem:[%s2] sm:$0x1]
    %v39 = vlaneseq
    %v40 = vshrl.u32 %v39, 7
    %v41 = vsub.s32 0, %v40
    %v42 = vrot.slane %v37, %v41
    %v52 = vunpack.c.l.b16 %v29
    %v53 = vunpack.c.l.b16 %v30
    %v54 = vunpack.c.l.b16 %v31
    %v55 = vunpack.c.l.b16 %v32
    %v56 = vunpack.c.l.b16 %v33
    %v57 = vunpack.c.l.b16 %v34
    %v58 = vunpack.c.l.b16 %v35
    %v59 = vunpack.c.l.b16 %v36
    %v60 = vpack.c.b16 %v53, %v52
    %v61 = vpack.c.b16 %v55, %v54
    %v62 = vpack.c.b16 %v57, %v56
    %v63 = vpack.c.b16 %v59, %v58
    %vm68 = vcmask 523264
    %v70 = vsel %vm68, %v28, 0
    %72 = vmatprep.subr.bf16.mxu0 0
    %73 = vmatpush1.bf16.msra.mxu0 %v60
    %74 = vmatprep.subr.bf16.mxu0 0
    %75 = vmatpush1.bf16.msra.mxu0 %v61
    %76 = vmatprep.subr.bf16.mxu0 0
    %77 = vmatpush1.bf16.msra.mxu0 %v62
    %78 = vmatprep.subr.bf16.mxu0 0
    %79 = vmatpush1.bf16.msra.mxu0 %v63
    %80 = vmatprep.subr.bf16.mxu0 0
    %81 = vmatpush1.bf16.msra.mxu0 0
    %82 = vmatprep.subr.bf16.mxu0 0
    %83 = vmatpush1.bf16.msra.mxu0 0
    %84 = vmatprep.subr.bf16.mxu0 0
    %85 = vmatpush1.bf16.msra.mxu0 0
    %86 = vmatprep.subr.bf16.mxu0 0
    %87 = vmatpush1.bf16.msra.mxu0 0
    %88 = vmatprep.subr.bf16.mxu0 0
    %89 = vmatpush1.bf16.msra.mxu0 0
    %90 = vmatprep.subr.bf16.mxu0 0
    %91 = vmatpush1.bf16.msra.mxu0 0
    %92 = vmatprep.subr.bf16.mxu0 0
    %93 = vmatpush1.bf16.msra.mxu0 0
    %94 = vmatprep.subr.bf16.mxu0 0
    %95 = vmatpush1.bf16.msra.mxu0 0
    %96 = vmatprep.subr.bf16.mxu0 0
    %97 = vmatpush1.bf16.msra.mxu0 0
    %98 = vmatprep.subr.bf16.mxu0 0
    %99 = vmatpush1.bf16.msra.mxu0 0
    %100 = vmatprep.subr.bf16.mxu0 0
    %101 = vmatpush1.bf16.msra.mxu0 0
    %102 = vmatprep.subr.bf16.mxu0 0
    %103 = vmatpush1.bf16.msra.mxu0 0
    %104 = vmatprep.mubr.bf16.mxu0 0
    %105 = vmatmul.mubr.bf16.gmra.mrb[0].mxu0 %v70
    %v106 = vpop.f32.mrb[0].mxu0
    %v107 = vadd.f32 %v42, %v106
    %v108 = vpop.f32.mrb[0].mxu0
    %v109 = vpop.f32.mrb[0].mxu0
    %v110 = vpop.f32.mrb[0].mxu0
    %111 = vdwg.mxu0
    %v112 = vand.u32 2147483647, %v107
    %v113 = vsub.f32 0.0, %v112
    %v114 = vmul.f32 %v113, 1.442695
    %v115 = vpow.pop %v114
    %v116 = vadd.f32 %v115, 1.0
    %v117 = vlog2.pop %v116
    %v118 = vmul.f32 %v117, 0.6931472
    %v119 = vmul.f32 -0.5, %v115
    %v120 = vadd.f32 %v119, 1.0
    %v121 = vmul.f32 %v120, %v115
    %v122 = vand.u32 2147483647, %v115
    %vm123 = vcmp.lt.f32.partialorder %v122, 0.0004427343
    %v124 = vsel %vm123, %v121, %v118
    %v125 = vmax.f32 %v107, 0.0
    %v126 = vadd.f32 %v124, %v125
    %v127 = vtanh.pop %v126
    %v128 = vmul.f32 %v107, %v127
    %v129 = vpack.c.bf16 %v128, %v128
    %v130 = vld [vmem:[%s3] sm:$0xf]
    %v131 = vld [vmem:[%s3 + $0x4] sm:$0xf]
    %v132 = vld [vmem:[%s3 + $0x8] sm:$0xf]
    %v133 = vld [vmem:[%s3 + $0xc] sm:$0xf]
    %v134 = vld [vmem:[%s3 + $0x10] sm:$0xf]
    %v135 = vld [vmem:[%s3 + $0x14] sm:$0xf]
    %v136 = vld [vmem:[%s3 + $0x18] sm:$0x1]
    %v137 = vld [vmem:[%s4] sm:$0x1]
    %v139 = vlaneseq
    %v140 = vshrl.u32 %v139, 7
    %v141 = vsub.s32 0, %v140
    %v142 = vrot.slane %v137, %v141
    %v151 = vunpack.c.l.b16 %v130
    %v152 = vunpack.c.l.b16 %v131
    %v153 = vunpack.c.l.b16 %v132
    %v154 = vunpack.c.l.b16 %v133
    %v155 = vunpack.c.l.b16 %v134
    %v156 = vunpack.c.l.b16 %v135
    %v157 = vunpack.c.l.b16 %v136
    %v158 = vpack.c.b16 %v152, %v151
    %v159 = vpack.c.b16 %v154, %v153
    %v160 = vpack.c.b16 %v156, %v155
    %v161 = vpack.c.b16 %v157, %v157
    %vm165 = vcmask 408576
    %v167 = vsel %vm165, %v129, 0
    %vm169 = vcmask 1040384
    %v171 = vsel %vm169, %v161, 0
    %173 = vmatprep.subr.bf16.mxu0 0
    %174 = vmatpush1.bf16.msra.mxu0 %v158
    %175 = vmatprep.subr.bf16.mxu0 0
    %176 = vmatpush1.bf16.msra.mxu0 %v159
    %177 = vmatprep.subr.bf16.mxu0 0
    %178 = vmatpush1.bf16.msra.mxu0 %v160
    %179 = vmatprep.subr.bf16.mxu0 0
    %180 = vmatpush1.bf16.msra.mxu0 %v171
    %181 = vmatprep.subr.bf16.mxu0 0
    %182 = vmatpush1.bf16.msra.mxu0 0
    %183 = vmatprep.subr.bf16.mxu0 0
    %184 = vmatpush1.bf16.msra.mxu0 0
    %185 = vmatprep.subr.bf16.mxu0 0
    %186 = vmatpush1.bf16.msra.mxu0 0
    %187 = vmatprep.subr.bf16.mxu0 0
    %188 = vmatpush1.bf16.msra.mxu0 0
    %189 = vmatprep.subr.bf16.mxu0 0
    %190 = vmatpush1.bf16.msra.mxu0 0
    %191 = vmatprep.subr.bf16.mxu0 0
    %192 = vmatpush1.bf16.msra.mxu0 0
    %193 = vmatprep.subr.bf16.mxu0 0
    %194 = vmatpush1.bf16.msra.mxu0 0
    %195 = vmatprep.subr.bf16.mxu0 0
    %196 = vmatpush1.bf16.msra.mxu0 0
    %197 = vmatprep.subr.bf16.mxu0 0
    %198 = vmatpush1.bf16.msra.mxu0 0
    %199 = vmatprep.subr.bf16.mxu0 0
    %200 = vmatpush1.bf16.msra.mxu0 0
    %201 = vmatprep.subr.bf16.mxu0 0
    %202 = vmatpush1.bf16.msra.mxu0 0
    %203 = vmatprep.subr.bf16.mxu0 0
    %204 = vmatpush1.bf16.msra.mxu0 0
    %205 = vmatprep.mubr.bf16.mxu0 0
    %206 = vmatmul.mubr.bf16.gmra.mrb[0].mxu0 %v167
    %v207 = vpop.f32.mrb[0].mxu0
    %v208 = vadd.f32 %v142, %v207
    %v209 = vpop.f32.mrb[0].mxu0
    %v210 = vpop.f32.mrb[0].mxu0
    %v211 = vpop.f32.mrb[0].mxu0
    %212 = vdwg.mxu0
    %v213 = vand.u32 2147483647, %v208
    %v214 = vsub.f32 0.0, %v213
    %v215 = vmul.f32 %v214, 1.442695
    %v216 = vpow.pop %v215
    %v217 = vadd.f32 %v216, 1.0
    %v218 = vlog2.pop %v217
    %v219 = vmul.f32 %v218, 0.6931472
    %v220 = vmul.f32 -0.5, %v216
    %v221 = vadd.f32 %v220, 1.0
    %v222 = vmul.f32 %v221, %v216
    %v223 = vand.u32 2147483647, %v216
    %vm224 = vcmp.lt.f32.partialorder %v223, 0.0004427343
    %v225 = vsel %vm224, %v222, %v219
    %v226 = vmax.f32 %v208, 0.0
    %v227 = vadd.f32 %v225, %v226
    %v228 = vtanh.pop %v227
    %v229 = vmul.f32 %v208, %v228
    %v230 = vpack.c.bf16 %v229, %v229
    %v231 = vld [vmem:[%s5] sm:$0xf]
    %v232 = vld [vmem:[%s5 + $0x4] sm:$0xf]
    %v233 = vld [vmem:[%s5 + $0x8] sm:$0xf]
    %v234 = vld [vmem:[%s5 + $0xc] sm:$0xf]
    %v235 = vld [vmem:[%s5 + $0x10] sm:$0xf]
    %v236 = vld [vmem:[%s5 + $0x14] sm:$0xf]
    %v237 = vld [vmem:[%s5 + $0x18] sm:$0x1]
    %v238 = vld [vmem:[%s6] sm:$0x1]
    %v240 = vlaneseq
    %v241 = vshrl.u32 %v240, 7
    %v242 = vsub.s32 0, %v241
    %v243 = vrot.slane %v238, %v242
    %v252 = vunpack.c.l.b16 %v231
    %v253 = vunpack.c.l.b16 %v232
    %v254 = vunpack.c.l.b16 %v233
    %v255 = vunpack.c.l.b16 %v234
    %v256 = vunpack.c.l.b16 %v235
    %v257 = vunpack.c.l.b16 %v236
    %v258 = vunpack.c.l.b16 %v237
    %v259 = vpack.c.b16 %v253, %v252
    %v260 = vpack.c.b16 %v255, %v254
    %v261 = vpack.c.b16 %v257, %v256
    %v262 = vpack.c.b16 %v258, %v258
    %v267 = vsel %vm165, %v230, 0
    %v270 = vsel %vm169, %v262, 0
    %272 = vmatprep.subr.bf16.mxu0 0
    %273 = vmatpush1.bf16.msra.mxu0 %v259
    %274 = vmatprep.subr.bf16.mxu0 0
    %275 = vmatpush1.bf16.msra.mxu0 %v260
    %276 = vmatprep.subr.bf16.mxu0 0
    %277 = vmatpush1.bf16.msra.mxu0 %v261
    %278 = vmatprep.subr.bf16.mxu0 0
    %279 = vmatpush1.bf16.msra.mxu0 %v270
    %280 = vmatprep.subr.bf16.mxu0 0
    %281 = vmatpush1.bf16.msra.mxu0 0
    %282 = vmatprep.subr.bf16.mxu0 0
    %283 = vmatpush1.bf16.msra.mxu0 0
    %284 = vmatprep.subr.bf16.mxu0 0
    %285 = vmatpush1.bf16.msra.mxu0 0
    %286 = vmatprep.subr.bf16.mxu0 0
    %287 = vmatpush1.bf16.msra.mxu0 0
    %288 = vmatprep.subr.bf16.mxu0 0
    %289 = vmatpush1.bf16.msra.mxu0 0
    %290 = vmatprep.subr.bf16.mxu0 0
    %291 = vmatpush1.bf16.msra.mxu0 0
    %292 = vmatprep.subr.bf16.mxu0 0
    %293 = vmatpush1.bf16.msra.mxu0 0
    %294 = vmatprep.subr.bf16.mxu0 0
    %295 = vmatpush1.bf16.msra.mxu0 0
    %296 = vmatprep.subr.bf16.mxu0 0
    %297 = vmatpush1.bf16.msra.mxu0 0
    %298 = vmatprep.subr.bf16.mxu0 0
    %299 = vmatpush1.bf16.msra.mxu0 0
    %300 = vmatprep.subr.bf16.mxu0 0
    %301 = vmatpush1.bf16.msra.mxu0 0
    %302 = vmatprep.subr.bf16.mxu0 0
    %303 = vmatpush1.bf16.msra.mxu0 0
    %304 = vmatprep.mubr.bf16.mxu0 0
    %305 = vmatmul.mubr.bf16.gmra.mrb[0].mxu0 %v267
    %v306 = vpop.f32.mrb[0].mxu0
    %v307 = vadd.f32 %v243, %v306
    %v308 = vpop.f32.mrb[0].mxu0
    %v309 = vpop.f32.mrb[0].mxu0
    %v310 = vpop.f32.mrb[0].mxu0
    %311 = vdwg.mxu0
    %312 = vmax.xlane.f32.xlu0 %v307
    %v313 = vpop.xlane.xlu0 %312
    %v314 = vsub.f32 %v307, %v313
    %v315 = vmul.f32 %v314, 1.442695
    %v316 = vpow.pop %v315
    %317 = vadd.xlane.f32.xlu0 %v316
    %v318 = vpop.xlane.xlu0 %317
    %v319 = vrcp.pop %v318
    %v320 = vmul.f32 %v316, %v319
    %321 = vst [vmem:[#allocation2] sm:$0xff] %v320
    // Predicated region
    $region30: #{tpu_custom_call.1} parent=1 // pred_check
      _
    $region31: #{tpu_custom_call.1} parent=1 // pred_check_branch
      %323 = sbr.rel (0) target = $region33
    $region32: #{tpu_custom_call.1} parent=1 // pred_region
      %s325 = ssub.s32 128, 128
      %326 = vsyncadd [#allocation3], %s325
      %s328 = sshll.u32 [#allocation2], 4
      %s329 = int_to_ptr.vmem [resolvable:$true] %s328
      %331 = dma.vmem_to_hbm [thread:$0]  %s329, 128, %s7, [#allocation3]
    $region33: #{tpu_custom_call.1} parent=1 // pred_fallthru
      _
    // Predicated region
    $region34: #{tpu_custom_call.1} parent=1 // pred_check
      _
    $region35: #{tpu_custom_call.1} parent=1 // pred_check_branch
      %333 = sbr.rel (0) target = $region37
    $region36: #{tpu_custom_call.1} parent=1 // pred_region
      %334 = dma.done [#allocation3], 128
    $region37: #{tpu_custom_call.1} parent=1 // pred_fallthru
      _
    %335 = vsyncpa [#allocation3], 1

</llo_original>
